<compile_context>
chip_gen: v7x
topology: tpu7x:2x2x1
jax: 0.10.0
libtpu: 0.0.40
codegen_flags: <defaults>
</compile_context>

<pallas_src>
import jax
import jax.numpy as jnp
from jax.experimental import pallas as pl
from jax.experimental.pallas import tpu as pltpu


def _round_up(n: int, m: int) -> int:
    return ((n + m - 1) // m) * m


def _vmem_capacity_bytes() -> int:
    try:
        return int(pltpu.get_tpu_info().vmem_capacity_bytes)
    except Exception:
        return 64 * 1024 * 1024  # conservative default (v7x per-TensorCore)


def _time_embed_kernel(x_ref, w_ref, b_ref, o_ref):
    # SiLU(x) = x * sigmoid(x). Transcendental path in f32 (v5e has no bf16
    # VPU/EUP); cast back to the input dtype only for the MXU operand so bf16
    # inputs take the native bf16 x bf16 -> f32 MXU path.
    x = x_ref[...]
    xf = x.astype(jnp.float32)
    silu = (xf * jax.nn.sigmoid(xf)).astype(x.dtype)

    # Linear: SiLU(x) @ W  with W already stored as (D, C_pad) -> canonical
    # (M,K)x(K,N) MXU matmul, f32 accumulation.
    acc = jnp.dot(silu, w_ref[...], preferred_element_type=jnp.float32)
    acc = acc + b_ref[...].astype(jnp.float32)   # (1, C_pad) broadcast over rows
    o_ref[...] = acc.astype(o_ref.dtype)


def prepare_time_embed_params(weight, bias, *, dtype=None, lane=128):
    """One-time parameter prep (at init, not per call).

    Takes PyTorch nn.Linear params W:(C, D), b:(C,). Returns
      w_padded : (D, C_pad)  -- transposed once, cast to `dtype`, lane-padded
      b_padded : (1, C_pad)
      C        : true number of output channels.
    """
    C, D = weight.shape
    Cp = _round_up(C, lane)
    if dtype is None:
        dtype = weight.dtype
    w = jnp.asarray(weight, dtype=dtype).T            # (D, C)
    b = jnp.asarray(bias, dtype=dtype)
    if Cp != C:
        w = jnp.pad(w, ((0, 0), (0, Cp - C)))
        b = jnp.pad(b, (0, Cp - C))
    return w, b.reshape(1, Cp), C


def _time_embed_call(x, w_padded, b_padded, *, block_b, vmem_limit,
                     single_buffer_consts):
    B, D = x.shape
    Cp = w_padded.shape[1]
    dtype = x.dtype
    itemsize = jnp.dtype(dtype).itemsize

    const_kwargs = {}
    if single_buffer_consts:
        # Constant index_map blocks are fetched once; one buffer is enough.
        const_kwargs = dict(pipeline_mode=pl.Buffered(buffer_count=1))

    cost = pl.CostEstimate(
        flops=2 * B * D * Cp + 4 * B * D,
        transcendentals=B * D,
        bytes_accessed=(B * D * itemsize
                        + w_padded.size * w_padded.dtype.itemsize
                        + b_padded.size * b_padded.dtype.itemsize
                        + B * Cp * itemsize),
    )

    return pl.pallas_call(
        _time_embed_kernel,
        out_shape=jax.ShapeDtypeStruct((B, Cp), dtype),
        grid=(pl.cdiv(B, block_b),),
        in_specs=[
            pl.BlockSpec((block_b, D), lambda i: (i, 0)),               # x tile
            pl.BlockSpec((D, Cp), lambda i: (0, 0), **const_kwargs),     # weight (resident)
            pl.BlockSpec((1, Cp), lambda i: (0, 0), **const_kwargs),     # bias (resident)
        ],
        out_specs=pl.BlockSpec((block_b, Cp), lambda i: (i, 0)),
        compiler_params=pltpu.CompilerParams(
            dimension_semantics=("parallel",),
            vmem_limit_bytes=vmem_limit,
        ),
        cost_estimate=cost,
    )(x, w_padded, b_padded)


def time_embed(x, w_padded, b_padded, out_channels, *, block_b=None):
    """x: (B, D); w_padded: (D, C_pad); b_padded: (1, C_pad) -> (B, 1, C)."""
    B, D = x.shape
    Dw, Cp = w_padded.shape
    assert Dw == D, (Dw, D)
    dtype = x.dtype
    itemsize = jnp.dtype(dtype).itemsize
    sublane = 8 if itemsize >= 4 else 16

    w_bytes = w_padded.size * w_padded.dtype.itemsize
    b_bytes = b_padded.size * b_padded.dtype.itemsize

    def working_set(bb, const_bufs):
        return (const_bufs * (w_bytes + b_bytes)
                + 2 * bb * D * itemsize       # x tile, double-buffered
                + 2 * bb * Cp * itemsize)     # out tile, double-buffered

    cap = _vmem_capacity_bytes()
    if block_b is None:
        # Big default tile (amortise per-step overhead, feed the MXU), shrunk
        # to the per-generation VMEM budget (v7x: 64 MiB, v5e/v6e: 128 MiB).
        target = 256 if itemsize >= 4 else 512
        block_b = min(_round_up(B, sublane), target)
        budget = int(cap * 0.75)
        while block_b > sublane and working_set(block_b, 1) > budget:
            block_b //= 2
    block_b = max(_round_up(block_b, sublane), sublane)

    # Explicit scoped-VMEM limit: sized to the working set (assume the
    # constants may end up double-buffered) plus headroom.
    vmem_limit = int(working_set(block_b, 2) * 1.25) + (2 << 20)
    vmem_limit = max(vmem_limit, 16 << 20)
    vmem_limit = min(vmem_limit, cap, 128 << 20)

    try:
        out = _time_embed_call(x, w_padded, b_padded, block_b=block_b,
                               vmem_limit=vmem_limit, single_buffer_consts=True)
    except Exception:
        # Fallback if single-buffering via pl.Buffered(1) is rejected by this
        # Pallas/Mosaic build; default double-buffering still fits the limit.
        out = _time_embed_call(x, w_padded, b_padded, block_b=block_b,
                               vmem_limit=vmem_limit, single_buffer_consts=False)

    # Drop channel lane-padding only if it was added; 'b c -> b 1 c' is glue.
    if Cp != out_channels:
        out = out[:, :out_channels]
    return out.reshape(B, 1, out_channels)


if __name__ == "__main__":
    key = jax.random.PRNGKey(0)
    k_x, k_w, k_b = jax.random.split(key, 3)

    B = 2               # batch
    time_emb_dim = 32   # linear input features
    in_channels = 16    # linear output features

    x = jax.random.normal(k_x, (B, time_emb_dim), dtype=jnp.float32)
    # PyTorch nn.Linear parameter shapes: W (C, D), b (C,)
    bound = 1.0 / float(jnp.sqrt(jnp.float32(time_emb_dim)))
    weight = jax.random.uniform(k_w, (in_channels, time_emb_dim),
                                minval=-bound, maxval=bound, dtype=jnp.float32)
    bias = jax.random.uniform(k_b, (in_channels,),
                              minval=-bound, maxval=bound, dtype=jnp.float32)

    # One-time param prep: transpose to (D, C_pad), cast to activation dtype,
    # lane-pad the output channels. Not a per-call cost.
    w_pad, b_pad, C = prepare_time_embed_params(weight, bias, dtype=x.dtype)

    out = time_embed(x, w_pad, b_pad, C)
    out = jax.block_until_ready(out)

    # Reference check in plain JAX (matches PyTorch TimeEmbed.forward).
    silu = x * jax.nn.sigmoid(x)
    ref = (silu @ weight.T + bias).reshape(B, 1, in_channels)
    assert out.shape == (B, 1, in_channels), out.shape
    assert jnp.allclose(out, ref, atol=1e-5, rtol=1e-5)

    print("KERNEL_OK")
</pallas_src>

<mosaic_0001>
module attributes {stable_mosaic.version = 11 : i64} {
  func.func @_time_embed_kernel(%arg0: i32, %arg1: memref<8x32xf32, #tpu.memory_space<vmem>>, %arg2: memref<32x128xf32, #tpu.memory_space<vmem>>, %arg3: memref<1x128xf32, #tpu.memory_space<vmem>>, %arg4: memref<8x128xf32, #tpu.memory_space<vmem>>) attributes {dimension_semantics = [#tpu.dimension_semantics<parallel>], iteration_bounds = array<i64: 1>, scalar_prefetch = 0 : i64, scratch_operands = 0 : i64, tpu.core_type = #tpu.core_type<tc>, window_params = [{transform_indices = @transform_0, window_bounds = array<i64: 8, 32>}, {pipeline_mode = #tpu.pipeline_mode<synchronous>, transform_indices = @transform_1, window_bounds = array<i64: 32, 128>}, {pipeline_mode = #tpu.pipeline_mode<synchronous>, transform_indices = @transform_2, window_bounds = array<i64: 1, 128>}, {transform_indices = @transform_3, window_bounds = array<i64: 8, 128>}]} {
    %c0 = arith.constant 0 : index
    %c0_0 = arith.constant 0 : index
    %0 = vector.load %arg1[%c0, %c0_0] : memref<8x32xf32, #tpu.memory_space<vmem>>, vector<8x32xf32>
    %1 = arith.negf %0 : vector<8x32xf32>
    %2 = math.exp %1 : vector<8x32xf32>
    %cst = arith.constant 1.000000e+00 : f32
    %3 = vector.broadcast %cst : f32 to vector<8x32xf32>
    %4 = arith.addf %3, %2 : vector<8x32xf32>
    %5 = arith.divf %3, %4 : vector<8x32xf32>
    %6 = arith.mulf %0, %5 : vector<8x32xf32>
    %c0_1 = arith.constant 0 : index
    %c0_2 = arith.constant 0 : index
    %7 = vector.load %arg2[%c0_1, %c0_2] : memref<32x128xf32, #tpu.memory_space<vmem>>, vector<32x128xf32>
    %cst_3 = arith.constant dense<0.000000e+00> : vector<8x128xf32>
    %8 = tpu.matmul %6, %7, %cst_3 {dimension_numbers = #tpu.dot_dimension_numbers<[1], [0], [0], [1], [0, 0, 1, 1], [], []>} : vector<8x32xf32>, vector<32x128xf32>, vector<8x128xf32> -> vector<8x128xf32>
    %c0_4 = arith.constant 0 : index
    %c0_5 = arith.constant 0 : index
    %9 = vector.load %arg3[%c0_4, %c0_5] : memref<1x128xf32, #tpu.memory_space<vmem>>, vector<1x128xf32>
    %10 = vector.broadcast %9 : vector<1x128xf32> to vector<8x128xf32>
    %11 = arith.addf %8, %10 : vector<8x128xf32>
    %c0_6 = arith.constant 0 : index
    %c0_7 = arith.constant 0 : index
    %12 = vector.load %arg4[%c0_6, %c0_7] : memref<8x128xf32, #tpu.memory_space<vmem>>, vector<8x128xf32>
    tpu.vector_store %arg4[%c0_6, %c0_7], %11 {strides = array<i32>} : memref<8x128xf32, #tpu.memory_space<vmem>>, vector<8x128xf32>,
    return
  }
  func.func @transform_0(%arg0: i32) -> (i32, i32) {
    %c0_i32 = arith.constant 0 : i32
    %c0_i32_0 = arith.constant 0 : i32
    return %arg0, %c0_i32 : i32, i32
  }
  func.func @transform_1(%arg0: i32) -> (i32, i32) {
    %c0_i32 = arith.constant 0 : i32
    %c0_i32_0 = arith.constant 0 : i32
    %c0_i32_1 = arith.constant 0 : i32
    return %c0_i32, %c0_i32_0 : i32, i32
  }
  func.func @transform_2(%arg0: i32) -> (i32, i32) {
    %c0_i32 = arith.constant 0 : i32
    %c0_i32_0 = arith.constant 0 : i32
    %c0_i32_1 = arith.constant 0 : i32
    return %c0_i32, %c0_i32_0 : i32, i32
  }
  func.func @transform_3(%arg0: i32) -> (i32, i32) {
    %c0_i32 = arith.constant 0 : i32
    %c0_i32_0 = arith.constant 0 : i32
    return %arg0, %c0_i32 : i32, i32
  }
}

module attributes {stable_mosaic.version = 11 : i64} {
  func.func @_time_embed_kernel(%arg0: i32, %arg1: memref<8x32xf32, #tpu.memory_space<vmem>>, %arg2: memref<32x128xf32, #tpu.memory_space<vmem>>, %arg3: memref<1x128xf32, #tpu.memory_space<vmem>>, %arg4: memref<8x128xf32, #tpu.memory_space<vmem>>) attributes {dimension_semantics = [#tpu.dimension_semantics<parallel>], iteration_bounds = array<i64: 1>, scalar_prefetch = 0 : i64, scratch_operands = 0 : i64, tpu.core_type = #tpu.core_type<tc>, window_params = [{transform_indices = @transform_0, window_bounds = array<i64: 8, 32>}, {pipeline_mode = #tpu.pipeline_mode<synchronous>, transform_indices = @transform_1, window_bounds = array<i64: 32, 128>}, {pipeline_mode = #tpu.pipeline_mode<synchronous>, transform_indices = @transform_2, window_bounds = array<i64: 1, 128>}, {transform_indices = @transform_3, window_bounds = array<i64: 8, 128>}]} {
    %c0 = arith.constant 0 : index
    %c0_0 = arith.constant 0 : index
    %0 = vector.load %arg1[%c0, %c0_0] : memref<8x32xf32, #tpu.memory_space<vmem>>, vector<8x32xf32>
    %1 = arith.negf %0 : vector<8x32xf32>
    %2 = math.exp %1 : vector<8x32xf32>
    %cst = arith.constant 1.000000e+00 : f32
    %3 = vector.broadcast %cst : f32 to vector<8x32xf32>
    %4 = arith.addf %3, %2 : vector<8x32xf32>
    %5 = arith.divf %3, %4 : vector<8x32xf32>
    %6 = arith.mulf %0, %5 : vector<8x32xf32>
    %c0_1 = arith.constant 0 : index
    %c0_2 = arith.constant 0 : index
    %7 = vector.load %arg2[%c0_1, %c0_2] : memref<32x128xf32, #tpu.memory_space<vmem>>, vector<32x128xf32>
    %cst_3 = arith.constant dense<0.000000e+00> : vector<8x128xf32>
    %8 = tpu.matmul %6, %7, %cst_3 {dimension_numbers = #tpu.dot_dimension_numbers<[1], [0], [0], [1], [0, 0, 1, 1], [], []>} : vector<8x32xf32>, vector<32x128xf32>, vector<8x128xf32> -> vector<8x128xf32>
    %c0_4 = arith.constant 0 : index
    %c0_5 = arith.constant 0 : index
    %9 = vector.load %arg3[%c0_4, %c0_5] : memref<1x128xf32, #tpu.memory_space<vmem>>, vector<1x128xf32>
    %10 = vector.broadcast %9 : vector<1x128xf32> to vector<8x128xf32>
    %11 = arith.addf %8, %10 : vector<8x128xf32>
    %c0_6 = arith.constant 0 : index
    %c0_7 = arith.constant 0 : index
    %12 = vector.load %arg4[%c0_6, %c0_7] : memref<8x128xf32, #tpu.memory_space<vmem>>, vector<8x128xf32>
    tpu.vector_store %arg4[%c0_6, %c0_7], %11 {strides = array<i32>} : memref<8x128xf32, #tpu.memory_space<vmem>>, vector<8x128xf32>,
    return
  }
  func.func @transform_0(%arg0: i32) -> (i32, i32) {
    %c0_i32 = arith.constant 0 : i32
    %c0_i32_0 = arith.constant 0 : i32
    return %arg0, %c0_i32 : i32, i32
  }
  func.func @transform_1(%arg0: i32) -> (i32, i32) {
    %c0_i32 = arith.constant 0 : i32
    %c0_i32_0 = arith.constant 0 : i32
    %c0_i32_1 = arith.constant 0 : i32
    return %c0_i32, %c0_i32_0 : i32, i32
  }
  func.func @transform_2(%arg0: i32) -> (i32, i32) {
    %c0_i32 = arith.constant 0 : i32
    %c0_i32_0 = arith.constant 0 : i32
    %c0_i32_1 = arith.constant 0 : i32
    return %c0_i32, %c0_i32_0 : i32, i32
  }
  func.func @transform_3(%arg0: i32) -> (i32, i32) {
    %c0_i32 = arith.constant 0 : i32
    %c0_i32_0 = arith.constant 0 : i32
    return %arg0, %c0_i32 : i32, i32
  }
}

</mosaic_0001>

<llo_original>
// kernel: tpu_custom_call.1
$region0: #{tpu_custom_call.1}
  #allocation0 [shape = 'u32[]', space=smem, size = 0x4, offset = 0x4, fixed_abs, tag = 'smem constant byte address 0x4 - core index']
  #allocation1 [shape = 'u32[144,128]{1,0:T(1,128)}', space=vmem, size = 0x12000, scoped, tag = 'internal scratch']
  %s0 = inlined_call_operand.hbm [shape: f32[2,32], index: 0, kind: input, shape index: {}]
  %s1 = inlined_call_operand.hbm [shape: f32[32,128], index: 1, kind: input, shape index: {}]
  %s2 = inlined_call_operand.vmem [shape: f32[1,128], index: 2, kind: input, shape index: {}]
  %s3 = inlined_call_operand.hbm [shape: f32[2,128], index: 3, kind: output, shape index: {}]
  %s4 = sld [smem:[#allocation0]]
  $region30: #{tpu_custom_call.1} parent=0
    _
  %s6 = ssub.s32 1, %s4
  %s7 = scalar_select 0, %s6, %s4
  $region1: #{tpu_custom_call.1} parent=0
    #allocation2 [shape = 'u8[4096]{0}', space=vmem, size = 0x1000, scoped, tag = 'input window, operand 0, single buffered']
    #allocation3 [shape = 's32[1]{0}', space=sflag, size = 0x4, scoped, tag = 'scoped memory for tpu_custom_call.1']
    #allocation4 [shape = 's32[1]{0}', space=sflag, size = 0x4, scoped, tag = 'scoped memory for tpu_custom_call.1']
    #allocation5 [shape = 'u8[16384]{0}', space=vmem, size = 0x4000, scoped, tag = 'input window, operand 1, single buffered']
    #allocation6 [shape = 's32[1]{0}', space=sflag, size = 0x4, scoped, tag = 'scoped memory for tpu_custom_call.1']
    #allocation7 [shape = 'u8[4096]{0}', space=vmem, size = 0x1000, scoped, tag = 'output window, operand 0, single buffered']
    %8 = vsyncpa [#allocation3], 0
    %9 = vsyncpa [#allocation6], 0
    %10 = vsyncpa [#allocation4], 0
    // Predicated region
    $region2: #{tpu_custom_call.1} parent=1 // pred_check
      _
    $region3: #{tpu_custom_call.1} parent=1 // pred_check_branch
      %12 = sbr.rel (0) target = $region5
    $region4: #{tpu_custom_call.1} parent=1 // pred_region
      %s14 = ssub.s32 128, 32
      %15 = vsyncadd [#allocation3], %s14
      %s16 = sshll.u32 [#allocation2], 4
      %s17 = int_to_ptr.vmem [resolvable:$true] %s16
      %22 = dma.hbm_to_vmem [thread:$0]  %s0, 32, %s17, [#allocation3], 32, 32, 2
    $region5: #{tpu_custom_call.1} parent=1 // pred_fallthru
      _
    // Predicated region
    $region6: #{tpu_custom_call.1} parent=1 // pred_check
      _
    $region7: #{tpu_custom_call.1} parent=1 // pred_check_branch
      %24 = sbr.rel (0) target = $region9
    $region8: #{tpu_custom_call.1} parent=1 // pred_region
      %s26 = ssub.s32 512, 512
      %27 = vsyncadd [#allocation6], %s26
      %s28 = sshll.u32 [#allocation5], 4
      %s29 = int_to_ptr.vmem [resolvable:$true] %s28
      %34 = dma.hbm_to_vmem [thread:$0]  %s1, 512, %s29, [#allocation6], 128, 128, 8
    $region9: #{tpu_custom_call.1} parent=1 // pred_fallthru
      _
    // Predicated region
    $region10: #{tpu_custom_call.1} parent=1 // pred_check
      _
    $region11: #{tpu_custom_call.1} parent=1 // pred_check_branch
      %36 = sbr.rel (0) target = $region13
    $region12: #{tpu_custom_call.1} parent=1 // pred_region
      _
    $region13: #{tpu_custom_call.1} parent=1 // pred_fallthru
      _
    // Predicated region
    $region14: #{tpu_custom_call.1} parent=1 // pred_check
      _
    $region15: #{tpu_custom_call.1} parent=1 // pred_check_branch
      %38 = sbr.rel (0) target = $region17
    $region16: #{tpu_custom_call.1} parent=1 // pred_region
      %39 = dma.done [#allocation3], 128
    $region17: #{tpu_custom_call.1} parent=1 // pred_fallthru
      _
    // Predicated region
    $region18: #{tpu_custom_call.1} parent=1 // pred_check
      _
    $region19: #{tpu_custom_call.1} parent=1 // pred_check_branch
      %41 = sbr.rel (0) target = $region21
    $region20: #{tpu_custom_call.1} parent=1 // pred_region
      %42 = dma.done [#allocation6], 512
    $region21: #{tpu_custom_call.1} parent=1 // pred_fallthru
      _
    %v43 = vld [vmem:[#allocation2] sm:$0xff]
    %v44 = vxor.u32 %v43, 2147483648
    %v45 = vmul.f32 %v44, 1.442695
    %v46 = vpow.pop %v45
    %v47 = vadd.f32 %v46, 1.0
    %v48 = vrcp.pop %v47
    %v49 = vmul.f32 1.0, %v48
    %v50 = vmul.f32 %v43, %v49
    %v51 = vld [vmem:[#allocation5] sm:$0xff]
    %v52 = vld [vmem:[#allocation5 + $0x8] sm:$0xff]
    %v53 = vld [vmem:[#allocation5 + $0x10] sm:$0xff]
    %v54 = vld [vmem:[#allocation5 + $0x18] sm:$0xff]
    %v55 = vld [vmem:[%s2] sm:$0x1]
    %v57 = vlaneseq
    %v58 = vshrl.u32 %v57, 7
    %v59 = vsub.s32 0, %v58
    %v60 = vrot.slane %v55, %v59
    %vm62 = vcmask 261120
    %v64 = vsel %vm62, %v50, 0
    %66 = vmatprep.subr.mxu0 0.0
    %67 = vmatpush1.msra.mxu0 %v51
    %68 = vmatprep.subr.mxu0 0.0
    %69 = vmatpush1.msra.mxu0 %v52
    %70 = vmatprep.subr.mxu0 0.0
    %71 = vmatpush1.msra.mxu0 %v53
    %72 = vmatprep.subr.mxu0 0.0
    %73 = vmatpush1.msra.mxu0 %v54
    %74 = vmatprep.subr.mxu0 0.0
    %75 = vmatpush1.msra.mxu0 0.0
    %76 = vmatprep.subr.mxu0 0.0
    %77 = vmatpush1.msra.mxu0 0.0
    %78 = vmatprep.subr.mxu0 0.0
    %79 = vmatpush1.msra.mxu0 0.0
    %80 = vmatprep.subr.mxu0 0.0
    %81 = vmatpush1.msra.mxu0 0.0
    %82 = vmatprep.subr.mxu0 0.0
    %83 = vmatpush1.msra.mxu0 0.0
    %84 = vmatprep.subr.mxu0 0.0
    %85 = vmatpush1.msra.mxu0 0.0
    %86 = vmatprep.subr.mxu0 0.0
    %87 = vmatpush1.msra.mxu0 0.0
    %88 = vmatprep.subr.mxu0 0.0
    %89 = vmatpush1.msra.mxu0 0.0
    %90 = vmatprep.subr.mxu0 0.0
    %91 = vmatpush1.msra.mxu0 0.0
    %92 = vmatprep.subr.mxu0 0.0
    %93 = vmatpush1.msra.mxu0 0.0
    %94 = vmatprep.subr.mxu0 0.0
    %95 = vmatpush1.msra.mxu0 0.0
    %96 = vmatprep.subr.mxu0 0.0
    %97 = vmatpush1.msra.mxu0 0.0
    %98 = vmatprep.subr.mxu0 0.0
    %99 = vmatpush1.msra.mxu0 0.0
    %100 = vmatprep.subr.mxu0 0.0
    %101 = vmatpush1.msra.mxu0 0.0
    %102 = vmatprep.subr.mxu0 0.0
    %103 = vmatpush1.msra.mxu0 0.0
    %104 = vmatprep.subr.mxu0 0.0
    %105 = vmatpush1.msra.mxu0 0.0
    %106 = vmatprep.subr.mxu0 0.0
    %107 = vmatpush1.msra.mxu0 0.0
    %108 = vmatprep.subr.mxu0 0.0
    %109 = vmatpush1.msra.mxu0 0.0
    %110 = vmatprep.subr.mxu0 0.0
    %111 = vmatpush1.msra.mxu0 0.0
    %112 = vmatprep.subr.mxu0 0.0
    %113 = vmatpush1.msra.mxu0 0.0
    %114 = vmatprep.subr.mxu0 0.0
    %115 = vmatpush1.msra.mxu0 0.0
    %116 = vmatprep.subr.mxu0 0.0
    %117 = vmatpush1.msra.mxu0 0.0
    %118 = vmatprep.subr.mxu0 0.0
    %119 = vmatpush1.msra.mxu0 0.0
    %120 = vmatprep.subr.mxu0 0.0
    %121 = vmatpush1.msra.mxu0 0.0
    %122 = vmatprep.subr.mxu0 0.0
    %123 = vmatpush1.msra.mxu0 0.0
    %124 = vmatprep.subr.mxu0 0.0
    %125 = vmatpush1.msra.mxu0 0.0
    %126 = vmatprep.subr.mxu0 0.0
    %127 = vmatpush1.msra.mxu0 0.0
    %128 = vmatprep.subr.mxu0 0.0
    %129 = vmatpush1.msra.mxu0 0.0
    %130 = vmatprep.mubr.f32.mxu0 0.0
    %131 = vmatmul.mubr.f32.gmra.mrb[0].mxu0 %v64
    %v132 = vpop.f32.mrb[0].mxu0
    %v133 = vadd.f32 %v60, %v132
    %v134 = vpop.f32.mrb[0].mxu0
    %135 = vdwg.mxu0
    %136 = vst [vmem:[#allocation7] sm:$0xff] %v133
    // Predicated region
    $region22: #{tpu_custom_call.1} parent=1 // pred_check
      _
    $region23: #{tpu_custom_call.1} parent=1 // pred_check_branch
      %138 = sbr.rel (0) target = $region25
    $region24: #{tpu_custom_call.1} parent=1 // pred_region
      %s140 = ssub.s32 128, 32
      %141 = vsyncadd [#allocation4], %s140
      %s142 = sshll.u32 [#allocation7], 4
      %s143 = int_to_ptr.vmem [resolvable:$true] %s142
      %148 = dma.vmem_to_hbm [thread:$0]  %s143, 32, %s3, [#allocation4], 32, 32, 2
    $region25: #{tpu_custom_call.1} parent=1 // pred_fallthru
      _
    // Predicated region
    $region26: #{tpu_custom_call.1} parent=1 // pred_check
      _
    $region27: #{tpu_custom_call.1} parent=1 // pred_check_branch
      %150 = sbr.rel (0) target = $region29
    $region28: #{tpu_custom_call.1} parent=1 // pred_region
      %151 = dma.done [#allocation4], 128
    $region29: #{tpu_custom_call.1} parent=1 // pred_fallthru
      _
    %152 = vsyncpa [#allocation3], 1
    %153 = vsyncpa [#allocation6], 1
    %154 = vsyncpa [#allocation4], 1

// kernel: tpu_custom_call.1
$region0: #{tpu_custom_call.1}
  #allocation0 [shape = 'u32[]', space=smem, size = 0x4, offset = 0x4, fixed_abs, tag = 'smem constant byte address 0x4 - core index']
  #allocation1 [shape = 'u32[144,128]{1,0:T(1,128)}', space=vmem, size = 0x12000, scoped, tag = 'internal scratch']
  %s0 = inlined_call_operand.hbm [shape: f32[2,32], index: 0, kind: input, shape index: {}]
  %s1 = inlined_call_operand.hbm [shape: f32[32,128], index: 1, kind: input, shape index: {}]
  %s2 = inlined_call_operand.vmem [shape: f32[1,128], index: 2, kind: input, shape index: {}]
  %s3 = inlined_call_operand.hbm [shape: f32[2,128], index: 3, kind: output, shape index: {}]
  %s4 = sld [smem:[#allocation0]]
  $region30: #{tpu_custom_call.1} parent=0
    _
  %s6 = ssub.s32 1, %s4
  %s7 = scalar_select 0, %s6, %s4
  $region1: #{tpu_custom_call.1} parent=0
    #allocation2 [shape = 'u8[4096]{0}', space=vmem, size = 0x1000, scoped, tag = 'input window, operand 0, single buffered']
    #allocation3 [shape = 's32[1]{0}', space=sflag, size = 0x4, scoped, tag = 'scoped memory for tpu_custom_call.1']
    #allocation4 [shape = 's32[1]{0}', space=sflag, size = 0x4, scoped, tag = 'scoped memory for tpu_custom_call.1']
    #allocation5 [shape = 'u8[16384]{0}', space=vmem, size = 0x4000, scoped, tag = 'input window, operand 1, single buffered']
    #allocation6 [shape = 's32[1]{0}', space=sflag, size = 0x4, scoped, tag = 'scoped memory for tpu_custom_call.1']
    #allocation7 [shape = 'u8[4096]{0}', space=vmem, size = 0x1000, scoped, tag = 'output window, operand 0, single buffered']
    %8 = vsyncpa [#allocation3], 0
    %9 = vsyncpa [#allocation6], 0
    %10 = vsyncpa [#allocation4], 0
    // Predicated region
    $region2: #{tpu_custom_call.1} parent=1 // pred_check
      _
    $region3: #{tpu_custom_call.1} parent=1 // pred_check_branch
      %12 = sbr.rel (0) target = $region5
    $region4: #{tpu_custom_call.1} parent=1 // pred_region
      %s14 = ssub.s32 128, 32
      %15 = vsyncadd [#allocation3], %s14
      %s16 = sshll.u32 [#allocation2], 4
      %s17 = int_to_ptr.vmem [resolvable:$true] %s16
      %22 = dma.hbm_to_vmem [thread:$0]  %s0, 32, %s17, [#allocation3], 32, 32, 2
    $region5: #{tpu_custom_call.1} parent=1 // pred_fallthru
      _
    // Predicated region
    $region6: #{tpu_custom_call.1} parent=1 // pred_check
      _
    $region7: #{tpu_custom_call.1} parent=1 // pred_check_branch
      %24 = sbr.rel (0) target = $region9
    $region8: #{tpu_custom_call.1} parent=1 // pred_region
      %s26 = ssub.s32 512, 512
      %27 = vsyncadd [#allocation6], %s26
      %s28 = sshll.u32 [#allocation5], 4
      %s29 = int_to_ptr.vmem [resolvable:$true] %s28
      %34 = dma.hbm_to_vmem [thread:$0]  %s1, 512, %s29, [#allocation6], 128, 128, 8
    $region9: #{tpu_custom_call.1} parent=1 // pred_fallthru
      _
    // Predicated region
    $region10: #{tpu_custom_call.1} parent=1 // pred_check
      _
    $region11: #{tpu_custom_call.1} parent=1 // pred_check_branch
      %36 = sbr.rel (0) target = $region13
    $region12: #{tpu_custom_call.1} parent=1 // pred_region
      _
    $region13: #{tpu_custom_call.1} parent=1 // pred_fallthru
      _
    // Predicated region
    $region14: #{tpu_custom_call.1} parent=1 // pred_check
      _
    $region15: #{tpu_custom_call.1} parent=1 // pred_check_branch
      %38 = sbr.rel (0) target = $region17
    $region16: #{tpu_custom_call.1} parent=1 // pred_region
      %39 = dma.done [#allocation3], 128
    $region17: #{tpu_custom_call.1} parent=1 // pred_fallthru
      _
    // Predicated region
    $region18: #{tpu_custom_call.1} parent=1 // pred_check
      _
    $region19: #{tpu_custom_call.1} parent=1 // pred_check_branch
      %41 = sbr.rel (0) target = $region21
    $region20: #{tpu_custom_call.1} parent=1 // pred_region
      %42 = dma.done [#allocation6], 512
    $region21: #{tpu_custom_call.1} parent=1 // pred_fallthru
      _
    %v43 = vld [vmem:[#allocation2] sm:$0xff]
    %v44 = vxor.u32 %v43, 2147483648
    %v45 = vmul.f32 %v44, 1.442695
    %v46 = vpow.pop %v45
    %v47 = vadd.f32 %v46, 1.0
    %v48 = vrcp.pop %v47
    %v49 = vmul.f32 1.0, %v48
    %v50 = vmul.f32 %v43, %v49
    %v51 = vld [vmem:[#allocation5] sm:$0xff]
    %v52 = vld [vmem:[#allocation5 + $0x8] sm:$0xff]
    %v53 = vld [vmem:[#allocation5 + $0x10] sm:$0xff]
    %v54 = vld [vmem:[#allocation5 + $0x18] sm:$0xff]
    %v55 = vld [vmem:[%s2] sm:$0x1]
    %v57 = vlaneseq
    %v58 = vshrl.u32 %v57, 7
    %v59 = vsub.s32 0, %v58
    %v60 = vrot.slane %v55, %v59
    %vm62 = vcmask 261120
    %v64 = vsel %vm62, %v50, 0
    %66 = vmatprep.subr.mxu0 0.0
    %67 = vmatpush1.msra.mxu0 %v51
    %68 = vmatprep.subr.mxu0 0.0
    %69 = vmatpush1.msra.mxu0 %v52
    %70 = vmatprep.subr.mxu0 0.0
    %71 = vmatpush1.msra.mxu0 %v53
    %72 = vmatprep.subr.mxu0 0.0
    %73 = vmatpush1.msra.mxu0 %v54
    %74 = vmatprep.subr.mxu0 0.0
    %75 = vmatpush1.msra.mxu0 0.0
    %76 = vmatprep.subr.mxu0 0.0
    %77 = vmatpush1.msra.mxu0 0.0
    %78 = vmatprep.subr.mxu0 0.0
    %79 = vmatpush1.msra.mxu0 0.0
    %80 = vmatprep.subr.mxu0 0.0
    %81 = vmatpush1.msra.mxu0 0.0
    %82 = vmatprep.subr.mxu0 0.0
    %83 = vmatpush1.msra.mxu0 0.0
    %84 = vmatprep.subr.mxu0 0.0
    %85 = vmatpush1.msra.mxu0 0.0
    %86 = vmatprep.subr.mxu0 0.0
    %87 = vmatpush1.msra.mxu0 0.0
    %88 = vmatprep.subr.mxu0 0.0
    %89 = vmatpush1.msra.mxu0 0.0
    %90 = vmatprep.subr.mxu0 0.0
    %91 = vmatpush1.msra.mxu0 0.0
    %92 = vmatprep.subr.mxu0 0.0
    %93 = vmatpush1.msra.mxu0 0.0
    %94 = vmatprep.subr.mxu0 0.0
    %95 = vmatpush1.msra.mxu0 0.0
    %96 = vmatprep.subr.mxu0 0.0
    %97 = vmatpush1.msra.mxu0 0.0
    %98 = vmatprep.subr.mxu0 0.0
    %99 = vmatpush1.msra.mxu0 0.0
    %100 = vmatprep.subr.mxu0 0.0
    %101 = vmatpush1.msra.mxu0 0.0
    %102 = vmatprep.subr.mxu0 0.0
    %103 = vmatpush1.msra.mxu0 0.0
    %104 = vmatprep.subr.mxu0 0.0
    %105 = vmatpush1.msra.mxu0 0.0
    %106 = vmatprep.subr.mxu0 0.0
    %107 = vmatpush1.msra.mxu0 0.0
    %108 = vmatprep.subr.mxu0 0.0
    %109 = vmatpush1.msra.mxu0 0.0
    %110 = vmatprep.subr.mxu0 0.0
    %111 = vmatpush1.msra.mxu0 0.0
    %112 = vmatprep.subr.mxu0 0.0
    %113 = vmatpush1.msra.mxu0 0.0
    %114 = vmatprep.subr.mxu0 0.0
    %115 = vmatpush1.msra.mxu0 0.0
    %116 = vmatprep.subr.mxu0 0.0
    %117 = vmatpush1.msra.mxu0 0.0
    %118 = vmatprep.subr.mxu0 0.0
    %119 = vmatpush1.msra.mxu0 0.0
    %120 = vmatprep.subr.mxu0 0.0
    %121 = vmatpush1.msra.mxu0 0.0
    %122 = vmatprep.subr.mxu0 0.0
    %123 = vmatpush1.msra.mxu0 0.0
    %124 = vmatprep.subr.mxu0 0.0
    %125 = vmatpush1.msra.mxu0 0.0
    %126 = vmatprep.subr.mxu0 0.0
    %127 = vmatpush1.msra.mxu0 0.0
    %128 = vmatprep.subr.mxu0 0.0
    %129 = vmatpush1.msra.mxu0 0.0
    %130 = vmatprep.mubr.f32.mxu0 0.0
    %131 = vmatmul.mubr.f32.gmra.mrb[0].mxu0 %v64
    %v132 = vpop.f32.mrb[0].mxu0
    %v133 = vadd.f32 %v60, %v132
    %v134 = vpop.f32.mrb[0].mxu0
    %135 = vdwg.mxu0
    %136 = vst [vmem:[#allocation7] sm:$0xff] %v133
    // Predicated region
    $region22: #{tpu_custom_call.1} parent=1 // pred_check
      _
    $region23: #{tpu_custom_call.1} parent=1 // pred_check_branch
      %138 = sbr.rel (0) target = $region25
    $region24: #{tpu_custom_call.1} parent=1 // pred_region
      %s140 = ssub.s32 128, 32
      %141 = vsyncadd [#allocation4], %s140
      %s142 = sshll.u32 [#allocation7], 4
      %s143 = int_to_ptr.vmem [resolvable:$true] %s142
      %148 = dma.vmem_to_hbm [thread:$0]  %s143, 32, %s3, [#allocation4], 32, 32, 2
    $region25: #{tpu_custom_call.1} parent=1 // pred_fallthru
      _
    // Predicated region
    $region26: #{tpu_custom_call.1} parent=1 // pred_check
      _
    $region27: #{tpu_custom_call.1} parent=1 // pred_check_branch
      %150 = sbr.rel (0) target = $region29
    $region28: #{tpu_custom_call.1} parent=1 // pred_region
      %151 = dma.done [#allocation4], 128
    $region29: #{tpu_custom_call.1} parent=1 // pred_fallthru
      _
    %152 = vsyncpa [#allocation3], 1
    %153 = vsyncpa [#allocation6], 1
    %154 = vsyncpa [#allocation4], 1

</llo_original>
